<compile_context>
chip_gen: v5e
topology: v5e:2x2
jax: 0.10.0
libtpu: 0.0.40
codegen_flags: <defaults>
</compile_context>

<pallas_src>
import math
from functools import partial

import jax
import jax.numpy as jnp
from jax.experimental import pallas as pl
from jax.experimental.pallas import tpu as pltpu


def _round_up(x, m):
    return (x + m - 1) // m * m


# ---------------------------------------------------------------------------
# Pallas kernel: single-K-step matmul with fused scale/bias (+ ReLU) epilogue
# ---------------------------------------------------------------------------
def _matmul_kernel(a_ref, b_ref, scale_ref, bias_ref, o_ref, *, relu):
    y = jnp.dot(a_ref[...], b_ref[...], preferred_element_type=jnp.float32)
    y = y * scale_ref[...] + bias_ref[...]
    if relu:
        y = jnp.maximum(y, 0.0)
    o_ref[...] = y


def matmul_scale_bias(a, b, scale, bias, relu):
    """out = act((a @ b) * scale + bias).  a:[M,K]  b:[K,N]  scale/bias:[N].

    bf16 MXU operands, f32 accumulation + epilogue.  K is not tiled (fits VMEM
    comfortably for every conv in this net, worst case K=4608 bf16)."""
    M, K = a.shape
    _, N = b.shape

    Kp = _round_up(K, 128)
    Np = _round_up(N, 128)
    TN = 256 if Np % 256 == 0 else 128         # feed the 256-wide MXU when possible
    TM = 256 if M > 256 else _round_up(M, 16)  # single M tile for small convs
    Mp = _round_up(M, TM)

    a_p = jnp.pad(a.astype(jnp.bfloat16), ((0, Mp - M), (0, Kp - K)))
    b_p = jnp.pad(b.astype(jnp.bfloat16), ((0, Kp - K), (0, Np - N)))
    s_p = jnp.pad(scale.astype(jnp.float32), (0, Np - N)).reshape(1, Np)
    c_p = jnp.pad(bias.astype(jnp.float32), (0, Np - N)).reshape(1, Np)

    cost = pl.CostEstimate(
        flops=2 * Mp * Np * Kp,
        transcendentals=0,
        bytes_accessed=2 * Mp * Kp + 2 * Kp * Np + 4 * Mp * Np + 8 * Np,
    )

    out = pl.pallas_call(
        partial(_matmul_kernel, relu=relu),
        out_shape=jax.ShapeDtypeStruct((Mp, Np), jnp.float32),
        grid_spec=pltpu.PrefetchScalarGridSpec(
            num_scalar_prefetch=0,
            grid=(Mp // TM, Np // TN),
            in_specs=[
                pl.BlockSpec((TM, Kp), lambda i, j: (i, 0)),
                pl.BlockSpec((Kp, TN), lambda i, j: (0, j)),
                pl.BlockSpec((1, TN), lambda i, j: (0, j)),
                pl.BlockSpec((1, TN), lambda i, j: (0, j)),
            ],
            out_specs=pl.BlockSpec((TM, TN), lambda i, j: (i, j)),
        ),
        compiler_params=pltpu.CompilerParams(
            dimension_semantics=("parallel", "parallel")),
        cost_estimate=cost,
    )(a_p, b_p, s_p, c_p)
    return out[:M, :N]


# ---------------------------------------------------------------------------
# Convolution wrappers (im2col glue in plain JAX, matmul in Pallas)
# ---------------------------------------------------------------------------
def _im2col(x, kh, kw, stride, pad):
    """x: [B,H,W,C] -> patches [B*Ho*Wo, kh*kw*C]."""
    B, H, W, C = x.shape
    Ho = (H + 2 * pad - kh) // stride + 1
    Wo = (W + 2 * pad - kw) // stride + 1
    xp = jnp.pad(x, ((0, 0), (pad, pad), (pad, pad), (0, 0)))
    cols = []
    for i in range(kh):
        for j in range(kw):
            cols.append(xp[:, i:i + stride * Ho:stride,
                           j:j + stride * Wo:stride, :])
    patches = jnp.stack(cols, axis=3)                    # [B,Ho,Wo,kh*kw,C]
    return patches.reshape(B * Ho * Wo, kh * kw * C), (B, Ho, Wo)


def conv2d(x, w_hwio, scale, bias, *, stride=1, pad=0, relu=False):
    kh, kw, cin, cout = w_hwio.shape
    patches, (B, Ho, Wo) = _im2col(x, kh, kw, stride, pad)
    wmat = w_hwio.reshape(kh * kw * cin, cout)
    out = matmul_scale_bias(patches, wmat, scale, bias, relu)
    return out.reshape(B, Ho, Wo, cout)


def _deconv_phase_weights(w_iohw):
    """ConvTranspose2d(k=4,s=2,p=1) weight [Cin,Cout,4,4] -> fused sub-pixel
    2x2 conv weight [2,2,Cin,4*Cout] (phase order (r,s) = 00,01,10,11)."""
    blocks = []
    for r in range(2):
        for s in range(2):
            kh_idx = jnp.array([3 - r, 1 - r])      # di = 0, 1
            kw_idx = jnp.array([3 - s, 1 - s])      # dj = 0, 1
            k = w_iohw[:, :, kh_idx[:, None], kw_idx[None, :]]   # [Cin,Cout,2,2]
            blocks.append(jnp.transpose(k, (2, 3, 0, 1)))        # [2,2,Cin,Cout]
    return jnp.concatenate(blocks, axis=-1)                      # [2,2,Cin,4*Cout]


def conv_transpose2d_k4s2p1(x, w_iohw, scale, bias, *, relu=False):
    """PyTorch ConvTranspose2d(k=4, s=2, p=1, bias=False) via sub-pixel phase
    decomposition: one 2x2 conv (pad=1) producing 4 phase slabs, interleaved
    into the 2x-upsampled output.  No zero-dilated intermediate."""
    B, H, W, Cin = x.shape
    Cout = w_iohw.shape[1]
    w4 = _deconv_phase_weights(w_iohw)                    # [2,2,Cin,4*Cout]
    s4 = jnp.tile(scale, 4)
    b4 = jnp.tile(bias, 4)
    out = conv2d(x, w4, s4, b4, stride=1, pad=1, relu=relu)   # [B,H+1,W+1,4*Cout]
    out = out.reshape(B, H + 1, W + 1, 4, Cout)
    y00 = out[:, :H, :W, 0]
    y01 = out[:, :H, 1:, 1]
    y10 = out[:, 1:, :W, 2]
    y11 = out[:, 1:, 1:, 3]
    y = jnp.stack([y00, y01, y10, y11], axis=3).reshape(B, H, W, 2, 2, Cout)
    y = jnp.transpose(y, (0, 1, 3, 2, 4, 5)).reshape(B, 2 * H, 2 * W, Cout)
    return y


# ---------------------------------------------------------------------------
# Deterministic parameter construction (mirrors PoseResNet.__init__)
# ---------------------------------------------------------------------------
def _bilinear_4x4():
    f = math.ceil(4 / 2)
    c = (2 * f - 1 - f % 2) / (2.0 * f)
    w = [[(1 - abs(i / f - c)) * (1 - abs(j / f - c)) for j in range(4)]
         for i in range(4)]
    return jnp.array(w, jnp.float32)


def init_params(key, in_ch, heads):
    k = key

    def nxt():
        nonlocal k
        k, sub = jax.random.split(k)
        return sub

    params = {}
    # synthetic backbone stem (backbone is an injected module in the original;
    # here: two stride-2 convs producing the 512-channel /4 feature map)
    params['backbone'] = [
        dict(w=jax.random.normal(nxt(), (3, 3, in_ch, 64), jnp.float32) * 0.05,
             b=jnp.zeros((64,), jnp.float32)),
        dict(w=jax.random.normal(nxt(), (3, 3, 64, 512), jnp.float32) * 0.02,
             b=jnp.zeros((512,), jnp.float32)),
    ]

    # deconv_layer: 3 x (DCN 3x3 -> BN -> ReLU -> ConvTranspose 4x4 s2 -> BN -> ReLU)
    bn_eps = 1e-5
    bn_scale = 1.0 / math.sqrt(1.0 + bn_eps)   # gamma=1, beta=0, running mean/var 0/1
    bil = _bilinear_4x4()
    num_filters = [256, 128, 64]
    inplanes = 512                              # '18' / '34' backbone
    deconv = []
    for nf in num_filters:
        # TODO(synk): DCN deformable offset/mask sampling has no clean Pallas
        # equivalent; a standard 3x3 conv is used in its place.
        dcn_w = jax.random.normal(nxt(), (3, 3, inplanes, nf), jnp.float32) * 0.01
        dcn_b = jnp.zeros((nf,), jnp.float32)
        up_w = jax.random.normal(nxt(), (nf, nf, 4, 4), jnp.float32) * 0.01
        up_w = up_w.at[:, 0, :, :].set(bil[None, :, :])   # fill_up_weights semantics
        deconv.append(dict(dcn_w=dcn_w, dcn_b=dcn_b, up_w=up_w,
                           bn_scale=jnp.float32(bn_scale)))
        inplanes = nf
    params['deconv'] = deconv

    # heads: Conv3x3(64->64) + ReLU + Conv1x1(64->classes)
    head_params = {}
    for head, classes in heads.items():
        if 'hm' in head:
            w1 = jax.random.normal(nxt(), (3, 3, 64, 64), jnp.float32) * 0.02
            b1 = jnp.zeros((64,), jnp.float32)
            w2 = jax.random.normal(nxt(), (1, 1, 64, classes), jnp.float32) * 0.02
            b2 = jnp.full((classes,), -2.19, jnp.float32)     # fc[-1].bias = -2.19
        else:
            w1 = jax.random.normal(nxt(), (3, 3, 64, 64), jnp.float32) * 0.001
            b1 = jnp.zeros((64,), jnp.float32)
            w2 = jax.random.normal(nxt(), (1, 1, 64, classes), jnp.float32) * 0.001
            b2 = jnp.zeros((classes,), jnp.float32)            # fill_fc_weights
        head_params[head] = dict(w1=w1, b1=b1, w2=w2, b2=b2)
    params['heads'] = head_params
    return params


# ---------------------------------------------------------------------------
# Forward pass (mirrors PoseResNet.forward)
# ---------------------------------------------------------------------------
def pose_resnet_forward(params, x_nchw):
    x = jnp.transpose(x_nchw, (0, 2, 3, 1)).astype(jnp.float32)  # NCHW -> NHWC

    # ----- backbone -----
    for layer in params['backbone']:
        cout = layer['w'].shape[-1]
        x = conv2d(x, layer['w'], jnp.ones((cout,), jnp.float32), layer['b'],
                   stride=2, pad=1, relu=True)

    # ----- deconv stack; eval-mode BN + ReLU fused into the matmul epilogue -----
    for layer in params['deconv']:
        nf = layer['dcn_w'].shape[-1]
        s = jnp.full((nf,), layer['bn_scale'], jnp.float32)
        x = conv2d(x, layer['dcn_w'], s, layer['dcn_b'] * s,
                   stride=1, pad=1, relu=True)                       # DCN->bn1->relu
        x = conv_transpose2d_k4s2p1(x, layer['up_w'], s,
                                    jnp.zeros((nf,), jnp.float32),
                                    relu=True)                       # up->bn2->relu

    # ----- heads (fused across branches: 2 pallas_calls total) -----
    head_names = list(params['heads'].keys())
    classes_list = [params['heads'][h]['w2'].shape[-1] for h in head_names]
    n_heads = len(head_names)

    w1_all = jnp.concatenate([params['heads'][h]['w1'] for h in head_names],
                             axis=-1)                                # [3,3,64,64*n]
    b1_all = jnp.concatenate([params['heads'][h]['b1'] for h in head_names])
    hidden = conv2d(x, w1_all, jnp.ones((64 * n_heads,), jnp.float32), b1_all,
                    stride=1, pad=1, relu=True)

    total = sum(classes_list)
    w2_all = jnp.zeros((1, 1, 64 * n_heads, total), jnp.float32)     # block-diagonal
    col = 0
    for idx, h in enumerate(head_names):
        w2 = params['heads'][h]['w2'][0, 0]                          # [64, classes]
        c = w2.shape[-1]
        w2_all = w2_all.at[0, 0, 64 * idx:64 * (idx + 1), col:col + c].set(w2)
        col += c
    b2_all = jnp.concatenate([params['heads'][h]['b2'] for h in head_names])
    out_all = conv2d(hidden, w2_all, jnp.ones((total,), jnp.float32), b2_all,
                     stride=1, pad=0, relu=False)

    ret = {}
    col = 0
    for h, c in zip(head_names, classes_list):
        ret[h] = jnp.transpose(out_all[..., col:col + c], (0, 3, 1, 2))  # NCHW
        col += c
    return ret


if __name__ == "__main__":
    key = jax.random.PRNGKey(0)
    kx, kp = jax.random.split(key)

    heads = {'hm': 2, 'wh': 2, 'reg': 2}
    x = jax.random.normal(kx, (2, 4, 16, 16), jnp.float32)   # NCHW input
    params = init_params(kp, in_ch=4, heads=heads)

    out = pose_resnet_forward(params, x)
    out = jax.block_until_ready(out)

    # backbone /4 -> 4x4, three 2x upsamples -> 32x32, 64 -> classes channels
    for h, v in out.items():
        assert v.shape == (2, heads[h], 32, 32), (h, v.shape)
        assert jnp.all(jnp.isfinite(v))
    print("KERNEL_OK")
</pallas_src>

<mosaic_0001>
module attributes {stable_mosaic.version = 11 : i64} {
  func.func @_matmul_kernel(%arg0: i32, %arg1: i32, %arg2: memref<128x128xbf16, #tpu.memory_space<vmem>>, %arg3: memref<128x128xbf16, #tpu.memory_space<vmem>>, %arg4: memref<1x128xf32, #tpu.memory_space<vmem>>, %arg5: memref<1x128xf32, #tpu.memory_space<vmem>>, %arg6: memref<128x128xf32, #tpu.memory_space<vmem>>) attributes {dimension_semantics = [#tpu.dimension_semantics<parallel>, #tpu.dimension_semantics<parallel>], iteration_bounds = array<i64: 1, 1>, scalar_prefetch = 0 : i64, scratch_operands = 0 : i64, tpu.core_type = #tpu.core_type<tc>, window_params = [{transform_indices = @transform_0, window_bounds = array<i64: 128, 128>}, {transform_indices = @transform_1, window_bounds = array<i64: 128, 128>}, {transform_indices = @transform_2, window_bounds = array<i64: 1, 128>}, {transform_indices = @transform_3, window_bounds = array<i64: 1, 128>}, {transform_indices = @transform_4, window_bounds = array<i64: 128, 128>}]} {
    %c0 = arith.constant 0 : index
    %c0_0 = arith.constant 0 : index
    %0 = vector.load %arg2[%c0, %c0_0] : memref<128x128xbf16, #tpu.memory_space<vmem>>, vector<128x128xbf16>
    %c0_1 = arith.constant 0 : index
    %c0_2 = arith.constant 0 : index
    %1 = vector.load %arg3[%c0_1, %c0_2] : memref<128x128xbf16, #tpu.memory_space<vmem>>, vector<128x128xbf16>
    %cst = arith.constant dense<0.000000e+00> : vector<128x128xf32>
    %2 = tpu.matmul %0, %1, %cst {dimension_numbers = #tpu.dot_dimension_numbers<[1], [0], [0], [1], [0, 0, 1, 1], [], []>} : vector<128x128xbf16>, vector<128x128xbf16>, vector<128x128xf32> -> vector<128x128xf32>
    %c0_3 = arith.constant 0 : index
    %c0_4 = arith.constant 0 : index
    %3 = vector.load %arg4[%c0_3, %c0_4] : memref<1x128xf32, #tpu.memory_space<vmem>>, vector<1x128xf32>
    %4 = vector.broadcast %3 : vector<1x128xf32> to vector<128x128xf32>
    %5 = arith.mulf %2, %4 : vector<128x128xf32>
    %c0_5 = arith.constant 0 : index
    %c0_6 = arith.constant 0 : index
    %6 = vector.load %arg5[%c0_5, %c0_6] : memref<1x128xf32, #tpu.memory_space<vmem>>, vector<1x128xf32>
    %7 = vector.broadcast %6 : vector<1x128xf32> to vector<128x128xf32>
    %8 = arith.addf %5, %7 : vector<128x128xf32>
    %cst_7 = arith.constant 0.000000e+00 : f32
    %9 = vector.broadcast %cst_7 : f32 to vector<128x128xf32>
    %10 = arith.maximumf %8, %9 : vector<128x128xf32>
    %c0_8 = arith.constant 0 : index
    %c0_9 = arith.constant 0 : index
    %11 = vector.load %arg6[%c0_8, %c0_9] : memref<128x128xf32, #tpu.memory_space<vmem>>, vector<128x128xf32>
    tpu.vector_store %arg6[%c0_8, %c0_9], %10 {strides = array<i32>} : memref<128x128xf32, #tpu.memory_space<vmem>>, vector<128x128xf32>,
    return
  }
  func.func @transform_0(%arg0: i32, %arg1: i32) -> (i32, i32) {
    %c0_i32 = arith.constant 0 : i32
    %c0_i32_0 = arith.constant 0 : i32
    return %arg0, %c0_i32 : i32, i32
  }
  func.func @transform_1(%arg0: i32, %arg1: i32) -> (i32, i32) {
    %c0_i32 = arith.constant 0 : i32
    %c0_i32_0 = arith.constant 0 : i32
    return %c0_i32, %arg1 : i32, i32
  }
  func.func @transform_2(%arg0: i32, %arg1: i32) -> (i32, i32) {
    %c0_i32 = arith.constant 0 : i32
    %c0_i32_0 = arith.constant 0 : i32
    return %c0_i32, %arg1 : i32, i32
  }
  func.func @transform_3(%arg0: i32, %arg1: i32) -> (i32, i32) {
    %c0_i32 = arith.constant 0 : i32
    %c0_i32_0 = arith.constant 0 : i32
    return %c0_i32, %arg1 : i32, i32
  }
  func.func @transform_4(%arg0: i32, %arg1: i32) -> (i32, i32) {
    %c0_i32 = arith.constant 0 : i32
    return %arg0, %arg1 : i32, i32
  }
}

</mosaic_0001>

<llo_original>
// kernel: tpu_custom_call.1
$region0: #{tpu_custom_call.1}
  #allocation0 [shape = 'u32[]', space=smem, size = 0x4, offset = 0x4, fixed_abs, tag = 'smem constant byte address 0x4 - core index']
  #allocation1 [shape = 'u32[72,128]{1,0:T(1,128)}', space=vmem, size = 0x9000, scoped, tag = 'internal scratch']
  %s0 = inlined_call_operand.hbm [shape: bf16[128,128], index: 0, kind: input, shape index: {}]
  %s1 = inlined_call_operand.hbm [shape: bf16[128,128], index: 1, kind: input, shape index: {}]
  %s2 = inlined_call_operand.vmem [shape: f32[1,128], index: 2, kind: input, shape index: {}]
  %s3 = inlined_call_operand.vmem [shape: f32[1,128], index: 3, kind: input, shape index: {}]
  %s4 = inlined_call_operand.hbm [shape: f32[128,128], index: 4, kind: output, shape index: {}]
  %s5 = sld [smem:[#allocation0]]
  $region34: #{tpu_custom_call.1} parent=0
    _
  %s7 = ssub.s32 1, %s5
  %s8 = scalar_select 0, %s7, %s5
  $region1: #{tpu_custom_call.1} parent=0
    #allocation2 [shape = 'u8[32768]{0}', space=vmem, size = 0x8000, scoped, tag = 'input window, operand 0, single buffered']
    #allocation3 [shape = 's32[1]{0}', space=sflag, size = 0x4, scoped, tag = 'scoped memory for tpu_custom_call.1']
    #allocation4 [shape = 's32[1]{0}', space=sflag, size = 0x4, scoped, tag = 'scoped memory for tpu_custom_call.1']
    #allocation5 [shape = 'u8[32768]{0}', space=vmem, size = 0x8000, scoped, tag = 'input window, operand 1, single buffered']
    #allocation6 [shape = 's32[1]{0}', space=sflag, size = 0x4, scoped, tag = 'scoped memory for tpu_custom_call.1']
    #allocation7 [shape = 'u8[65536]{0}', space=vmem, size = 0x10000, scoped, tag = 'output window, operand 0, single buffered']
    %9 = vsyncpa [#allocation3], 0
    %10 = vsyncpa [#allocation6], 0
    %11 = vsyncpa [#allocation4], 0
    // Predicated region
    $region2: #{tpu_custom_call.1} parent=1 // pred_check
      _
    $region3: #{tpu_custom_call.1} parent=1 // pred_check_branch
      %13 = sbr.rel (0) target = $region5
    $region4: #{tpu_custom_call.1} parent=1 // pred_region
      %15 = vsyncadd [#allocation3], 0
      %s16 = sshll.u32 %s0, 4
      %s17 = int_to_ptr.hbm [resolvable:$true] %s16
      %s18 = sshll.u32 [#allocation2], 4
      %s19 = int_to_ptr.vmem [resolvable:$true] %s18
      %24 = dma.hbm_to_vmem [thread:$0]  %s17, 1024, %s19, [#allocation3], 64, 64, 4
    $region5: #{tpu_custom_call.1} parent=1 // pred_fallthru
      _
    // Predicated region
    $region6: #{tpu_custom_call.1} parent=1 // pred_check
      _
    $region7: #{tpu_custom_call.1} parent=1 // pred_check_branch
      %26 = sbr.rel (0) target = $region9
    $region8: #{tpu_custom_call.1} parent=1 // pred_region
      %28 = vsyncadd [#allocation6], 0
      %s29 = sshll.u32 %s1, 4
      %s30 = int_to_ptr.hbm [resolvable:$true] %s29
      %s31 = sshll.u32 [#allocation5], 4
      %s32 = int_to_ptr.vmem [resolvable:$true] %s31
      %37 = dma.hbm_to_vmem [thread:$0]  %s30, 1024, %s32, [#allocation6], 64, 64, 4
    $region9: #{tpu_custom_call.1} parent=1 // pred_fallthru
      _
    // Predicated region
    $region10: #{tpu_custom_call.1} parent=1 // pred_check
      _
    $region11: #{tpu_custom_call.1} parent=1 // pred_check_branch
      %39 = sbr.rel (0) target = $region13
    $region12: #{tpu_custom_call.1} parent=1 // pred_region
      _
    $region13: #{tpu_custom_call.1} parent=1 // pred_fallthru
      _
    // Predicated region
    $region14: #{tpu_custom_call.1} parent=1 // pred_check
      _
    $region15: #{tpu_custom_call.1} parent=1 // pred_check_branch
      %41 = sbr.rel (0) target = $region17
    $region16: #{tpu_custom_call.1} parent=1 // pred_region
      _
    $region17: #{tpu_custom_call.1} parent=1 // pred_fallthru
      _
    // Predicated region
    $region18: #{tpu_custom_call.1} parent=1 // pred_check
      _
    $region19: #{tpu_custom_call.1} parent=1 // pred_check_branch
      %43 = sbr.rel (0) target = $region21
    $region20: #{tpu_custom_call.1} parent=1 // pred_region
      %45 = dma.done [#allocation3], 1024
    $region21: #{tpu_custom_call.1} parent=1 // pred_fallthru
      _
    // Predicated region
    $region22: #{tpu_custom_call.1} parent=1 // pred_check
      _
    $region23: #{tpu_custom_call.1} parent=1 // pred_check_branch
      %47 = sbr.rel (0) target = $region25
    $region24: #{tpu_custom_call.1} parent=1 // pred_region
      %49 = dma.done [#allocation6], 1024
    $region25: #{tpu_custom_call.1} parent=1 // pred_fallthru
      _
    %v50 = vld [vmem:[#allocation2] sm:$0xf]
    %v51 = vld [vmem:[#allocation2 + $0x4] sm:$0xf]
    %v52 = vld [vmem:[#allocation2 + $0x8] sm:$0xf]
    %v53 = vld [vmem:[#allocation2 + $0xc] sm:$0xf]
    %v54 = vld [vmem:[#allocation2 + $0x10] sm:$0xf]
    %v55 = vld [vmem:[#allocation2 + $0x14] sm:$0xf]
    %v56 = vld [vmem:[#allocation2 + $0x18] sm:$0xf]
    %v57 = vld [vmem:[#allocation2 + $0x1c] sm:$0xf]
    %v58 = vld [vmem:[#allocation2 + $0x20] sm:$0xf]
    %v59 = vld [vmem:[#allocation2 + $0x24] sm:$0xf]
    %v60 = vld [vmem:[#allocation2 + $0x28] sm:$0xf]
    %v61 = vld [vmem:[#allocation2 + $0x2c] sm:$0xf]
    %v62 = vld [vmem:[#allocation2 + $0x30] sm:$0xf]
    %v63 = vld [vmem:[#allocation2 + $0x34] sm:$0xf]
    %v64 = vld [vmem:[#allocation2 + $0x38] sm:$0xf]
    %v65 = vld [vmem:[#allocation2 + $0x3c] sm:$0xf]
    %v66 = vld [vmem:[#allocation5] sm:$0xf]
    %v67 = vld [vmem:[#allocation5 + $0x4] sm:$0xf]
    %v68 = vld [vmem:[#allocation5 + $0x8] sm:$0xf]
    %v69 = vld [vmem:[#allocation5 + $0xc] sm:$0xf]
    %v70 = vld [vmem:[#allocation5 + $0x10] sm:$0xf]
    %v71 = vld [vmem:[#allocation5 + $0x14] sm:$0xf]
    %v72 = vld [vmem:[#allocation5 + $0x18] sm:$0xf]
    %v73 = vld [vmem:[#allocation5 + $0x1c] sm:$0xf]
    %v74 = vld [vmem:[#allocation5 + $0x20] sm:$0xf]
    %v75 = vld [vmem:[#allocation5 + $0x24] sm:$0xf]
    %v76 = vld [vmem:[#allocation5 + $0x28] sm:$0xf]
    %v77 = vld [vmem:[#allocation5 + $0x2c] sm:$0xf]
    %v78 = vld [vmem:[#allocation5 + $0x30] sm:$0xf]
    %v79 = vld [vmem:[#allocation5 + $0x34] sm:$0xf]
    %v80 = vld [vmem:[#allocation5 + $0x38] sm:$0xf]
    %v81 = vld [vmem:[#allocation5 + $0x3c] sm:$0xf]
    %v98 = vunpack.c.l.b16 %v50
    %v99 = vunpack.c.l.b16 %v51
    %v100 = vunpack.c.l.b16 %v52
    %v101 = vunpack.c.l.b16 %v53
    %v102 = vunpack.c.l.b16 %v54
    %v103 = vunpack.c.l.b16 %v55
    %v104 = vunpack.c.l.b16 %v56
    %v105 = vunpack.c.l.b16 %v57
    %v106 = vunpack.c.l.b16 %v58
    %v107 = vunpack.c.l.b16 %v59
    %v108 = vunpack.c.l.b16 %v60
    %v109 = vunpack.c.l.b16 %v61
    %v110 = vunpack.c.l.b16 %v62
    %v111 = vunpack.c.l.b16 %v63
    %v112 = vunpack.c.l.b16 %v64
    %v113 = vunpack.c.l.b16 %v65
    %v114 = vpack.c.b16 %v99, %v98
    %v115 = vpack.c.b16 %v101, %v100
    %v116 = vpack.c.b16 %v103, %v102
    %v117 = vpack.c.b16 %v105, %v104
    %v118 = vpack.c.b16 %v107, %v106
    %v119 = vpack.c.b16 %v109, %v108
    %v120 = vpack.c.b16 %v111, %v110
    %v121 = vpack.c.b16 %v113, %v112
    %v146 = vunpack.c.l.b16 %v66
    %v147 = vunpack.c.l.b16 %v67
    %v148 = vunpack.c.l.b16 %v68
    %v149 = vunpack.c.l.b16 %v69
    %v150 = vunpack.c.l.b16 %v70
    %v151 = vunpack.c.l.b16 %v71
    %v152 = vunpack.c.l.b16 %v72
    %v153 = vunpack.c.l.b16 %v73
    %v154 = vunpack.c.l.b16 %v74
    %v155 = vunpack.c.l.b16 %v75
    %v156 = vunpack.c.l.b16 %v76
    %v157 = vunpack.c.l.b16 %v77
    %v158 = vunpack.c.l.b16 %v78
    %v159 = vunpack.c.l.b16 %v79
    %v160 = vunpack.c.l.b16 %v80
    %v161 = vunpack.c.l.b16 %v81
    %v162 = vpack.c.b16 %v147, %v146
    %v163 = vpack.c.b16 %v149, %v148
    %v164 = vpack.c.b16 %v151, %v150
    %v165 = vpack.c.b16 %v153, %v152
    %v166 = vpack.c.b16 %v155, %v154
    %v167 = vpack.c.b16 %v157, %v156
    %v168 = vpack.c.b16 %v159, %v158
    %v169 = vpack.c.b16 %v161, %v160
    %178 = vmatpush.bf16.msra.mxu0 %v169
    %179 = vmatpush.bf16.msra.mxu0 %v168
    %180 = vmatpush.bf16.msra.mxu0 %v167
    %181 = vmatpush.bf16.msra.mxu0 %v166
    %182 = vmatpush.bf16.msra.mxu0 %v165
    %183 = vmatpush.bf16.msra.mxu0 %v164
    %184 = vmatpush.bf16.msra.mxu0 %v163
    %185 = vmatpush.bf16.msra.mxu0 %v162
    %186 = vmatmul.bf16.gmra.mxu0 %v114
    %v187 = vpop.f32.mrf.mxu0
    %v188 = vadd.f32 0.0, %v187
    %v189 = vpop.f32.mrf.mxu0
    %v190 = vadd.f32 0.0, %v189
    %191 = vmatmul.bf16.gmra.mxu0 %v115
    %v192 = vpop.f32.mrf.mxu0
    %v193 = vadd.f32 0.0, %v192
    %v194 = vpop.f32.mrf.mxu0
    %v195 = vadd.f32 0.0, %v194
    %196 = vmatmul.bf16.gmra.mxu0 %v116
    %v197 = vpop.f32.mrf.mxu0
    %v198 = vadd.f32 0.0, %v197
    %v199 = vpop.f32.mrf.mxu0
    %v200 = vadd.f32 0.0, %v199
    %201 = vmatmul.bf16.gmra.mxu0 %v117
    %v202 = vpop.f32.mrf.mxu0
    %v203 = vadd.f32 0.0, %v202
    %v204 = vpop.f32.mrf.mxu0
    %v205 = vadd.f32 0.0, %v204
    %206 = vmatmul.bf16.gmra.mxu0 %v118
    %v207 = vpop.f32.mrf.mxu0
    %v208 = vadd.f32 0.0, %v207
    %v209 = vpop.f32.mrf.mxu0
    %v210 = vadd.f32 0.0, %v209
    %211 = vmatmul.bf16.gmra.mxu0 %v119
    %v212 = vpop.f32.mrf.mxu0
    %v213 = vadd.f32 0.0, %v212
    %v214 = vpop.f32.mrf.mxu0
    %v215 = vadd.f32 0.0, %v214
    %216 = vmatmul.bf16.gmra.mxu0 %v120
    %v217 = vpop.f32.mrf.mxu0
    %v218 = vadd.f32 0.0, %v217
    %v219 = vpop.f32.mrf.mxu0
    %v220 = vadd.f32 0.0, %v219
    %221 = vmatmul.bf16.gmra.mxu0 %v121
    %v222 = vpop.f32.mrf.mxu0
    %v223 = vadd.f32 0.0, %v222
    %v224 = vpop.f32.mrf.mxu0
    %v225 = vadd.f32 0.0, %v224
    %226 = vdwg.mxu0
    %v227 = vld [vmem:[%s2] sm:$0x1]
    %v229 = vperm.slane %v227, 0
    %v231 = vmul.f32 %v188, %v229
    %v232 = vmul.f32 %v190, %v229
    %v233 = vmul.f32 %v193, %v229
    %v234 = vmul.f32 %v195, %v229
    %v235 = vmul.f32 %v198, %v229
    %v236 = vmul.f32 %v200, %v229
    %v237 = vmul.f32 %v203, %v229
    %v238 = vmul.f32 %v205, %v229
    %v239 = vmul.f32 %v208, %v229
    %v240 = vmul.f32 %v210, %v229
    %v241 = vmul.f32 %v213, %v229
    %v242 = vmul.f32 %v215, %v229
    %v243 = vmul.f32 %v218, %v229
    %v244 = vmul.f32 %v220, %v229
    %v245 = vmul.f32 %v223, %v229
    %v246 = vmul.f32 %v225, %v229
    %v247 = vld [vmem:[%s3] sm:$0x1]
    %v249 = vperm.slane %v247, 0
    %v251 = vadd.f32 %v231, %v249
    %v252 = vadd.f32 %v232, %v249
    %v253 = vadd.f32 %v233, %v249
    %v254 = vadd.f32 %v234, %v249
    %v255 = vadd.f32 %v235, %v249
    %v256 = vadd.f32 %v236, %v249
    %v257 = vadd.f32 %v237, %v249
    %v258 = vadd.f32 %v238, %v249
    %v259 = vadd.f32 %v239, %v249
    %v260 = vadd.f32 %v240, %v249
    %v261 = vadd.f32 %v241, %v249
    %v262 = vadd.f32 %v242, %v249
    %v263 = vadd.f32 %v243, %v249
    %v264 = vadd.f32 %v244, %v249
    %v265 = vadd.f32 %v245, %v249
    %v266 = vadd.f32 %v246, %v249
    %v267 = vmax.f32 %v251, 0.0
    %v268 = vmax.f32 %v252, 0.0
    %v269 = vmax.f32 %v253, 0.0
    %v270 = vmax.f32 %v254, 0.0
    %v271 = vmax.f32 %v255, 0.0
    %v272 = vmax.f32 %v256, 0.0
    %v273 = vmax.f32 %v257, 0.0
    %v274 = vmax.f32 %v258, 0.0
    %v275 = vmax.f32 %v259, 0.0
    %v276 = vmax.f32 %v260, 0.0
    %v277 = vmax.f32 %v261, 0.0
    %v278 = vmax.f32 %v262, 0.0
    %v279 = vmax.f32 %v263, 0.0
    %v280 = vmax.f32 %v264, 0.0
    %v281 = vmax.f32 %v265, 0.0
    %v282 = vmax.f32 %v266, 0.0
    %283 = vst [vmem:[#allocation7] sm:$0xff] %v267
    %284 = vst [vmem:[#allocation7 + $0x8] sm:$0xff] %v268
    %285 = vst [vmem:[#allocation7 + $0x10] sm:$0xff] %v269
    %286 = vst [vmem:[#allocation7 + $0x18] sm:$0xff] %v270
    %287 = vst [vmem:[#allocation7 + $0x20] sm:$0xff] %v271
    %288 = vst [vmem:[#allocation7 + $0x28] sm:$0xff] %v272
    %289 = vst [vmem:[#allocation7 + $0x30] sm:$0xff] %v273
    %290 = vst [vmem:[#allocation7 + $0x38] sm:$0xff] %v274
    %291 = vst [vmem:[#allocation7 + $0x40] sm:$0xff] %v275
    %292 = vst [vmem:[#allocation7 + $0x48] sm:$0xff] %v276
    %293 = vst [vmem:[#allocation7 + $0x50] sm:$0xff] %v277
    %294 = vst [vmem:[#allocation7 + $0x58] sm:$0xff] %v278
    %295 = vst [vmem:[#allocation7 + $0x60] sm:$0xff] %v279
    %296 = vst [vmem:[#allocation7 + $0x68] sm:$0xff] %v280
    %297 = vst [vmem:[#allocation7 + $0x70] sm:$0xff] %v281
    %298 = vst [vmem:[#allocation7 + $0x78] sm:$0xff] %v282
    // Predicated region
    $region26: #{tpu_custom_call.1} parent=1 // pred_check
      _
    $region27: #{tpu_custom_call.1} parent=1 // pred_check_branch
      %300 = sbr.rel (0) target = $region29
    $region28: #{tpu_custom_call.1} parent=1 // pred_region
      %302 = vsyncadd [#allocation4], 0
      %s303 = sshll.u32 [#allocation7], 4
      %s304 = int_to_ptr.vmem [resolvable:$true] %s303
      %s305 = sshll.u32 %s4, 4
      %s306 = int_to_ptr.hbm [resolvable:$true] %s305
      %311 = dma.vmem_to_hbm [thread:$0]  %s304, 2048, %s306, [#allocation4], 128, 128, 8
    $region29: #{tpu_custom_call.1} parent=1 // pred_fallthru
      _
    // Predicated region
    $region30: #{tpu_custom_call.1} parent=1 // pred_check
      _
    $region31: #{tpu_custom_call.1} parent=1 // pred_check_branch
      %313 = sbr.rel (0) target = $region33
    $region32: #{tpu_custom_call.1} parent=1 // pred_region
      %315 = dma.done [#allocation4], 2048
    $region33: #{tpu_custom_call.1} parent=1 // pred_fallthru
      _
    %316 = vsyncpa [#allocation3], 1
    %317 = vsyncpa [#allocation6], 1
    %318 = vsyncpa [#allocation4], 1

</llo_original>
